<compile_context>
chip_gen: v7x
topology: tpu7x:2x2x1
jax: 0.10.0
libtpu: 0.0.40
codegen_flags: <defaults>
</compile_context>

<pallas_src>
import functools

import jax
import jax.numpy as jnp
from jax import lax
from jax.experimental import pallas as pl
from jax.experimental.pallas import tpu as pltpu


_VMEM_BUDGET = 24 * 1024 * 1024   # total buffer budget (in x2 + out x2 + acc)
_VMEM_LIMIT = 32 * 1024 * 1024    # explicit scoped-VMEM limit (<= physical on v5e/v6e/v7x)
_MAX_HW_TILE = 4096               # keeps the unrolled per-step lane-chunk loop <= 32 adds


def _round_up(x, m):
    return ((x + m - 1) // m) * m


def _cdiv(a, b):
    return -(-a // b)


def _num_tensorcores():
    """Best-effort TensorCore count (v7x: 2, v5e/v6e: 1)."""
    try:
        info = pltpu.get_tpu_info()
    except Exception:
        return 2
    for name in ("num_cores", "core_count", "num_tensorcores", "tensorcore_count",
                 "cores_per_chip", "num_cores_per_chip"):
        v = getattr(info, name, None)
        if isinstance(v, int) and not isinstance(v, bool) and v >= 1:
            return v
    # Unknown field layout: assume 2.  Wrongly splitting on a 1-core chip costs
    # one extra ~0.35us grid step; failing to split on v7x would idle half the chip.
    return 2


def _gem_kernel_single(x_ref, o_ref, *, p, p_int, inv_hw, eps):
    """Whole spatial map per step: no accumulator, no pl.when gating."""
    x = jnp.maximum(x_ref[...].astype(jnp.float32), eps)      # clamp(min=eps)
    xp = lax.integer_pow(x, p_int) if p_int is not None else x ** p
    s = jnp.sum(xp, axis=-1, keepdims=True)                    # single XLU reduce
    o_ref[...] = ((s * inv_hw) ** (1.0 / p)).astype(o_ref.dtype)


def _gem_kernel_multi(x_ref, o_ref, acc_ref, *, p, p_int, inv_hw, eps,
                      hw, hw_tile, ragged):
    """H*W split across grid axis 1; deferred cross-lane reduce."""
    k = pl.program_id(1)

    @pl.when(k == 0)
    def _init():
        acc_ref[...] = jnp.zeros_like(acc_ref)

    x = jnp.maximum(x_ref[...].astype(jnp.float32), eps)
    xp = lax.integer_pow(x, p_int) if p_int is not None else x ** p
    if ragged:
        # Boundary-block contents are undefined: zero lanes past the real H*W.
        lane = lax.broadcasted_iota(jnp.int32, xp.shape, 1) + k * hw_tile
        xp = jnp.where(lane < hw, xp, 0.0)

    # VALU-only adds of 128-lane chunks (whole vregs, static slices); the XLU
    # cross-lane reduce is deferred to the final k step.
    partial = xp[:, 0:128]
    for j in range(1, hw_tile // 128):
        partial = partial + xp[:, j * 128:(j + 1) * 128]
    acc_ref[...] += partial

    @pl.when(k == pl.num_programs(1) - 1)
    def _finalize():
        s = jnp.sum(acc_ref[...], axis=-1, keepdims=True)
        o_ref[...] = ((s * inv_hw) ** (1.0 / p)).astype(o_ref.dtype)


def generalized_mean_pooling(x, norm=3.0, eps=1e-6, output_size=1,
                             vmem_budget_bytes=_VMEM_BUDGET):
    """GeM pooling.  x: (N, C, H, W) -> (N, C, 1, 1)."""
    assert norm > 0
    assert output_size == 1, "kernel implements global GeM (output_size=1)"
    p = float(norm)
    p_int = int(p) if (p == int(p) and 1 <= int(p) <= 16) else None

    n, c, h, w = x.shape
    nc, hw = n * c, h * w
    x2d = x.reshape(nc, hw)                       # free, contiguous reshape

    itemsize = jnp.dtype(x.dtype).itemsize
    row_align = max(8, 32 // itemsize)            # sublane pack: f32->8, bf16->16, int8->32
    lanes_full = _round_up(hw, 128)               # lane-padded VMEM footprint of one row
    out_row_bytes = 2 * 128 * itemsize            # double-buffered (rows,1) out block (lane-padded)
    acc_row_bytes = 128 * 4                       # (rows,128) f32 accumulator (multi-block only)

    # ---- choose the H*W tile -------------------------------------------------
    per_row_single = 2 * lanes_full * itemsize + out_row_bytes
    if per_row_single * row_align <= vmem_budget_bytes:
        hw_tile, n_hw_blocks = hw, 1              # canonical case: whole map per step
        per_row = per_row_single
    else:
        hw_tile = (vmem_budget_bytes // row_align - out_row_bytes - acc_row_bytes) // (2 * itemsize)
        hw_tile = max(128, min(_MAX_HW_TILE, (hw_tile // 128) * 128))
        n_hw_blocks = _cdiv(hw, hw_tile)
        per_row = 2 * hw_tile * itemsize + out_row_bytes + acc_row_bytes

    # ---- choose the row tile purely from the (lane-padded) byte budget --------
    block_rows = max(row_align, (vmem_budget_bytes // per_row) // row_align * row_align)
    block_rows = min(block_rows, _round_up(nc, row_align))
    n_row_blocks = _cdiv(nc, block_rows)

    # Megacore: make sure the "parallel" row axis has >= 2 blocks on multi-TC chips.
    if _num_tensorcores() > 1:
        while n_row_blocks < 2 and block_rows > row_align:
            block_rows = max(row_align, _round_up(block_rows // 2, row_align))
            n_row_blocks = _cdiv(nc, block_rows)

    inv_hw = 1.0 / float(hw)
    if n_hw_blocks == 1:
        kernel = functools.partial(_gem_kernel_single, p=p, p_int=p_int,
                                   inv_hw=inv_hw, eps=float(eps))
        grid = (n_row_blocks,)
        in_specs = [pl.BlockSpec((block_rows, hw), lambda i: (i, 0))]
        out_specs = pl.BlockSpec((block_rows, 1), lambda i: (i, 0))
        scratch_shapes = []
        dim_sem = ("parallel",)
    else:
        kernel = functools.partial(_gem_kernel_multi, p=p, p_int=p_int,
                                   inv_hw=inv_hw, eps=float(eps),
                                   hw=hw, hw_tile=hw_tile,
                                   ragged=(hw % hw_tile != 0))
        grid = (n_row_blocks, n_hw_blocks)        # reduction axis last
        in_specs = [pl.BlockSpec((block_rows, hw_tile), lambda i, k: (i, k))]
        out_specs = pl.BlockSpec((block_rows, 1), lambda i, k: (i, 0))
        scratch_shapes = [pltpu.VMEM((block_rows, 128), jnp.float32)]
        dim_sem = ("parallel", "arbitrary")

    out2d = pl.pallas_call(
        kernel,
        out_shape=jax.ShapeDtypeStruct((nc, 1), x.dtype),
        grid_spec=pltpu.PrefetchScalarGridSpec(
            num_scalar_prefetch=0,
            grid=grid,
            in_specs=in_specs,
            out_specs=out_specs,
            scratch_shapes=scratch_shapes,
        ),
        compiler_params=pltpu.CompilerParams(
            dimension_semantics=dim_sem,
            vmem_limit_bytes=_VMEM_LIMIT,
        ),
    )(x2d)

    return out2d.reshape(n, c, 1, 1)


def _reference(x, norm=3.0, eps=1e-6):
    xc = jnp.maximum(x.astype(jnp.float32), eps) ** norm
    return jnp.mean(xc, axis=(2, 3), keepdims=True) ** (1.0 / norm)


if __name__ == "__main__":
    norm, eps = 3.0, 1e-6  # GeneralizedMeanPooling(norm=3.0, output_size=1)

    # Case 1: small NCHW input consistent with the module's conv-feature-map usage.
    x = jax.random.normal(jax.random.PRNGKey(0), (2, 4, 16, 16), dtype=jnp.float32)
    out = jax.block_until_ready(generalized_mean_pooling(x, norm=norm, eps=eps))
    ref = _reference(x, norm=norm, eps=eps)
    assert out.shape == (2, 4, 1, 1), out.shape
    assert jnp.allclose(out, ref.astype(out.dtype), atol=1e-5, rtol=1e-5), (
        jnp.max(jnp.abs(out - ref)))

    # Case 2: N*C not a multiple of the sublane pack -> ragged last row block,
    # handled by Pallas boundary clipping (no wrapper-side padding pass).
    x2 = jax.random.normal(jax.random.PRNGKey(1), (1, 5, 4, 4), dtype=jnp.float32)
    out2 = jax.block_until_ready(generalized_mean_pooling(x2, norm=norm, eps=eps))
    ref2 = _reference(x2, norm=norm, eps=eps)
    assert out2.shape == (1, 5, 1, 1), out2.shape
    assert jnp.allclose(out2, ref2.astype(out2.dtype), atol=1e-5, rtol=1e-5), (
        jnp.max(jnp.abs(out2 - ref2)))

    # Case 3: force the multi-hw-block path (ragged last lane block, in-kernel
    # iota mask, deferred cross-lane reduce) by shrinking the VMEM budget.
    x3 = jax.random.normal(jax.random.PRNGKey(2), (2, 3, 32, 40), dtype=jnp.float32)
    out3 = jax.block_until_ready(
        generalized_mean_pooling(x3, norm=norm, eps=eps, vmem_budget_bytes=64 * 1024))
    ref3 = _reference(x3, norm=norm, eps=eps)
    assert out3.shape == (2, 3, 1, 1), out3.shape
    assert jnp.allclose(out3, ref3.astype(out3.dtype), atol=1e-5, rtol=1e-5), (
        jnp.max(jnp.abs(out3 - ref3)))

    print("KERNEL_OK")
</pallas_src>

<mosaic_0001>
module attributes {stable_mosaic.version = 11 : i64} {
  func.func @_gem_kernel_single(%arg0: i32, %arg1: memref<8x256xf32, #tpu.memory_space<vmem>>, %arg2: memref<8x1xf32, #tpu.memory_space<vmem>>) attributes {dimension_semantics = [#tpu.dimension_semantics<parallel>], iteration_bounds = array<i64: 1>, scalar_prefetch = 0 : i64, scratch_operands = 0 : i64, tpu.core_type = #tpu.core_type<tc>, window_params = [{transform_indices = @transform_0, window_bounds = array<i64: 8, 256>}, {transform_indices = @transform_1, window_bounds = array<i64: 8, 1>}]} {
    %c0 = arith.constant 0 : index
    %c0_0 = arith.constant 0 : index
    %0 = vector.load %arg1[%c0, %c0_0] : memref<8x256xf32, #tpu.memory_space<vmem>>, vector<8x256xf32>
    %cst = arith.constant 9.99999997E-7 : f32
    %1 = vector.broadcast %cst : f32 to vector<8x256xf32>
    %2 = arith.maximumf %0, %1 : vector<8x256xf32>
    %3 = arith.mulf %2, %2 : vector<8x256xf32>
    %4 = arith.mulf %2, %3 : vector<8x256xf32>
    %cst_1 = arith.constant dense<0.000000e+00> : vector<8xf32>
    %5 = vector.multi_reduction <add>, %4, %cst_1 [1] : vector<8x256xf32> to vector<8xf32>
    %6 = vector.shape_cast %5 : vector<8xf32> to vector<8x1xf32>
    %cst_2 = arith.constant 3.906250e-03 : f32
    %7 = vector.broadcast %cst_2 : f32 to vector<8x1xf32>
    %8 = arith.mulf %6, %7 : vector<8x1xf32>
    %cst_3 = arith.constant 0.333333343 : f32
    %9 = vector.broadcast %cst_3 : f32 to vector<8x1xf32>
    %10 = math.powf %8, %9 : vector<8x1xf32>
    %c0_4 = arith.constant 0 : index
    %c0_5 = arith.constant 0 : index
    %11 = vector.load %arg2[%c0_4, %c0_5] : memref<8x1xf32, #tpu.memory_space<vmem>>, vector<8x1xf32>
    tpu.vector_store %arg2[%c0_4, %c0_5], %10 {strides = array<i32>} : memref<8x1xf32, #tpu.memory_space<vmem>>, vector<8x1xf32>,
    return
  }
  func.func @transform_0(%arg0: i32) -> (i32, i32) {
    %c0_i32 = arith.constant 0 : i32
    %c0_i32_0 = arith.constant 0 : i32
    return %arg0, %c0_i32 : i32, i32
  }
  func.func @transform_1(%arg0: i32) -> (i32, i32) {
    %c0_i32 = arith.constant 0 : i32
    %c0_i32_0 = arith.constant 0 : i32
    return %arg0, %c0_i32 : i32, i32
  }
}

</mosaic_0001>

<llo_original>
// kernel: tpu_custom_call.1
$region0: #{tpu_custom_call.1}
  #allocation0 [shape = 'u32[]', space=smem, size = 0x4, offset = 0x4, fixed_abs, tag = 'smem constant byte address 0x4 - core index']
  #allocation1 [shape = 'u32[144,128]{1,0:T(1,128)}', space=vmem, size = 0x12000, scoped, tag = 'internal scratch']
  %s0 = inlined_call_operand.hbm [shape: f32[8,256], index: 0, kind: input, shape index: {}]
  %s1 = inlined_call_operand.vmem [shape: f32[8,1], index: 1, kind: output, shape index: {}]
  %s2 = sld [smem:[#allocation0]]
  $region18: #{tpu_custom_call.1} parent=0
    _
  %s4 = ssub.s32 1, %s2
  %s5 = scalar_select 0, %s4, %s2
  $region1: #{tpu_custom_call.1} parent=0
    #allocation2 [shape = 'u8[8192]{0}', space=vmem, size = 0x2000, scoped, tag = 'input window, operand 0, single buffered']
    #allocation3 [shape = 's32[1]{0}', space=sflag, size = 0x4, scoped, tag = 'scoped memory for tpu_custom_call.1']
    %6 = vsyncpa [#allocation3], 0
    // Predicated region
    $region2: #{tpu_custom_call.1} parent=1 // pred_check
      _
    $region3: #{tpu_custom_call.1} parent=1 // pred_check_branch
      %8 = sbr.rel (0) target = $region5
    $region4: #{tpu_custom_call.1} parent=1 // pred_region
      %s10 = ssub.s32 256, 256
      %11 = vsyncadd [#allocation3], %s10
      %s13 = sshll.u32 [#allocation2], 4
      %s14 = int_to_ptr.vmem [resolvable:$true] %s13
      %16 = dma.hbm_to_vmem [thread:$0]  %s0, 256, %s14, [#allocation3]
    $region5: #{tpu_custom_call.1} parent=1 // pred_fallthru
      _
    // Predicated region
    $region6: #{tpu_custom_call.1} parent=1 // pred_check
      _
    $region7: #{tpu_custom_call.1} parent=1 // pred_check_branch
      %18 = sbr.rel (0) target = $region9
    $region8: #{tpu_custom_call.1} parent=1 // pred_region
      %19 = dma.done [#allocation3], 256
    $region9: #{tpu_custom_call.1} parent=1 // pred_fallthru
      _
    %v20 = vld [vmem:[#allocation2] sm:$0xff]
    %v21 = vld [vmem:[#allocation2 + $0x8] sm:$0xff]
    %v22 = vmax.f32 %v20, 1e-06
    %v23 = vmax.f32 %v21, 1e-06
    %v24 = vmul.f32 %v22, %v22
    %v25 = vmul.f32 %v23, %v23
    %v26 = vmul.f32 %v22, %v24
    %v27 = vmul.f32 %v23, %v25
    %v28 = vadd.f32 %v26, %v27
    %29 = vadd.xlane.f32.xlu0 %v28
    %v30 = vpop.xlane.xlu0 %29
    %v31 = vmul.f32 %v30, 0.00390625
    %v32 = vpow.f32 %v31, 0.33333334
    %vm33 = vcmask 7168
    %34 = vst.msk [vmem:[%s1] sm:$0xff] %vm33, %v32
    // Predicated region
    $region10: #{tpu_custom_call.1} parent=1 // pred_check
      _
    $region11: #{tpu_custom_call.1} parent=1 // pred_check_branch
      %36 = sbr.rel (0) target = $region13
    $region12: #{tpu_custom_call.1} parent=1 // pred_region
      _
    $region13: #{tpu_custom_call.1} parent=1 // pred_fallthru
      _
    // Predicated region
    $region14: #{tpu_custom_call.1} parent=1 // pred_check
      _
    $region15: #{tpu_custom_call.1} parent=1 // pred_check_branch
      %38 = sbr.rel (0) target = $region17
    $region16: #{tpu_custom_call.1} parent=1 // pred_region
      _
    $region17: #{tpu_custom_call.1} parent=1 // pred_fallthru
      _
    %39 = vsyncpa [#allocation3], 1

</llo_original>
